<compile_context>
chip_gen: v5e
topology: v5e:2x2
jax: 0.10.0
libtpu: 0.0.40
codegen_flags: <defaults>
</compile_context>

<pallas_src>
import jax
import jax.numpy as jnp
import numpy as np
from jax.experimental import pallas as pl
from jax.experimental.pallas import tpu as pltpu

# ---- hyperparameters implied by CNN_Glove.__init__ (small demo sizes) ----
D = 300               # GloVe embedding dim (hard-coded in the module)
CO = 8                # args.kernel_num
KS = (3, 4, 5)        # args.kernel_sizes = "3,4,5"
C = 1                 # single output logit (conc == 0 path)
B = 2                 # batch size
L = 16                # sequence length
VOC = 50              # voc_size + 2 rows of the embedding matrix

KMAX = max(KS)
NCO = len(KS) * CO                 # 24 packed output channels (= concat width)
BTILE = min(B, 128)                # batch tile per grid step (32..128 for prod)
NTILES = B // BTILE
N_ROWS = BTILE * L                 # flattened matmul M dimension per grid step

# host-side 0/1 mask of valid conv output positions, per sequence:
# column j*CO+c belongs to kernel size KS[j]; position t valid iff t <= L-K.
_VALID_LEN = np.repeat(np.array([L - K + 1 for K in KS], np.int32), CO)       # (NCO,)
_MASK_SEQ = (np.arange(L)[:, None] < _VALID_LEN[None, :]).astype(np.float32)  # (L, NCO)


def cnn_glove_kernel(ids_ref, emb_ref, wtaps_ref, bias_ref, mask_ref,
                     wfc_ref, bfc_ref, out_ref):
    """Fused embedding gather + multi-size conv + ReLU + max-pool + fc1."""
    # (1) embedding gather as a one-hot @ table MXU matmul (toy vocab in VMEM).
    # TODO(synk): for a real ~400K-word GloVe vocab keep the table in HBM
    # (BlockSpec(memory_space=pl.ANY)) and row-gather with a double-buffered
    # pltpu.make_async_copy instead of a one-hot matmul.
    ids = ids_ref[...]                                                   # (N_ROWS, 1) i32
    onehot = ids == jax.lax.broadcasted_iota(jnp.int32, (N_ROWS, VOC), 1)
    x = jnp.dot(onehot.astype(jnp.bfloat16), emb_ref[...],
                preferred_element_type=jnp.float32)                      # (N_ROWS, D) f32
    # cast once, exactly at the MXU boundary (exact: table values are bf16)
    x_bf = x.astype(jnp.bfloat16)

    # (2) conv over all kernel sizes as KMAX accumulated 2-D matmuls with
    # M = BTILE*L.  Tap k's (N, NCO) result is shifted up by k rows before
    # accumulation, so acc[b*L + t, :] = sum_k emb[b, t+k, :] @ W_k.
    # Rows whose receptive field would spill into the next sequence are
    # exactly the rows the valid-mask zeroes below, so no time padding needed.
    acc = jnp.dot(x_bf, wtaps_ref[0], preferred_element_type=jnp.float32)
    for k in range(1, KMAX):
        pk = jnp.dot(x_bf, wtaps_ref[k], preferred_element_type=jnp.float32)
        # shift result up by k rows; the (k, NCO) tail is masked anyway
        acc = acc + jnp.concatenate([pk[k:, :], pk[:k, :] * 0.0], axis=0)

    # (3) bias + ReLU (f32 VPU), zero-mask invalid time positions (equivalent
    # to the -inf mask because acc >= 0 post-ReLU), per-sequence max-pool.
    acc = jnp.maximum(acc + bias_ref[...], 0.0)                          # (N_ROWS, NCO)
    acc = acc * mask_ref[...]
    pooled = jnp.max(acc.reshape(BTILE, L, NCO), axis=1)                 # (BTILE, NCO)

    # (4) dropout = identity at eval; fc1 folded in, emitting a lane-dense
    # (1, BTILE) logits row (batch on the lane axis).
    logit = jax.lax.dot_general(wfc_ref[...], pooled,
                                dimension_numbers=(((1,), (1,)), ((), ())),
                                preferred_element_type=jnp.float32)      # (1, BTILE)
    out_ref[...] = logit + bfc_ref[...]


def cnn_glove_forward(x_ids, emb_bf16, wtaps_bf16, bias_p, wfc_row, bfc):
    assert B % BTILE == 0
    # batch-tiled, flattened token ids: row b_local*L + t of tile i is token t
    # of sequence i*BTILE + b_local
    ids3 = x_ids.reshape(NTILES, N_ROWS, 1).astype(jnp.int32)
    mask = jnp.asarray(np.tile(_MASK_SEQ, (BTILE, 1)))                   # (N_ROWS, NCO)

    out = pl.pallas_call(
        cnn_glove_kernel,
        out_shape=jax.ShapeDtypeStruct((NTILES, BTILE), jnp.float32),
        grid_spec=pltpu.PrefetchScalarGridSpec(
            num_scalar_prefetch=0,
            grid=(NTILES,),
            in_specs=[
                pl.BlockSpec((None, N_ROWS, 1), lambda i: (i, 0, 0)),    # token ids
                pl.BlockSpec((VOC, D), lambda i: (0, 0)),                # emb table (bf16)
                pl.BlockSpec((KMAX, D, NCO), lambda i: (0, 0, 0)),       # packed conv taps
                pl.BlockSpec((1, NCO), lambda i: (0, 0)),                # conv bias
                pl.BlockSpec((N_ROWS, NCO), lambda i: (0, 0)),           # valid-time mask
                pl.BlockSpec((1, NCO), lambda i: (0, 0)),                # fc1 weight row
                pl.BlockSpec((1, 1), lambda i: (0, 0)),                  # fc1 bias
            ],
            # lane-dense logits: batch index on the lane axis
            out_specs=pl.BlockSpec((1, BTILE), lambda i: (i, 0)),
        ),
        compiler_params=pltpu.CompilerParams(
            dimension_semantics=("parallel",)),      # shards tiles across TCs on v7x
    )(ids3, emb_bf16, wtaps_bf16, bias_p, mask, wfc_row, bfc)
    return out.reshape(B)                            # squeeze(1) -> (B,)


def reference_forward(emb_matrix, x_ids, conv_ws, conv_bs, w_fc, b_fc):
    """Pure-JAX f32 reference mirroring the PyTorch forward (eval mode)."""
    x_emb = emb_matrix[x_ids]                        # (B, L, D)
    pooled = []
    for (w, b), K in zip(zip(conv_ws, conv_bs), KS):
        lout = L - K + 1
        acc = jnp.zeros((B, lout, CO), jnp.float32)
        for k in range(K):
            acc = acc + jnp.einsum('bld,dc->blc', x_emb[:, k:k + lout, :], w[k])
        acc = jnp.maximum(acc + b[None, None, :], 0.0)
        pooled.append(jnp.max(acc, axis=1))
    feat = jnp.concatenate(pooled, axis=1)           # (B, len(Ks)*Co)
    return (feat @ w_fc + b_fc)[:, 0]


if __name__ == "__main__":
    key = jax.random.PRNGKey(0)
    k_emb, k_ids, k_fc, k_bfc, *k_convs = jax.random.split(key, 4 + 2 * len(KS))

    # frozen embedding table (stand-in for the GloVe matrix) + token ids
    emb_matrix = jax.random.normal(k_emb, (VOC, D), jnp.float32) * 0.1
    x_ids = jax.random.randint(k_ids, (B, L), 0, VOC, dtype=jnp.int32)

    # conv weights: PyTorch Conv2d(1, Co, (K, D)) weight is (Co, 1, K, D);
    # quantize through bf16 once (the kernel runs the MXU in bf16) and use the
    # SAME rounded values in the reference so the comparison stays tight.
    conv_ws, conv_bs = [], []
    for i, K in enumerate(KS):
        w_pt = jax.random.normal(k_convs[2 * i], (CO, 1, K, D), jnp.float32) * 0.05
        b_pt = jax.random.normal(k_convs[2 * i + 1], (CO,), jnp.float32) * 0.05
        w_q = w_pt.astype(jnp.bfloat16).astype(jnp.float32)
        conv_ws.append(jnp.transpose(w_q[:, 0], (1, 2, 0)))    # (K, D, CO)
        conv_bs.append(b_pt)                                   # (CO,)

    # fc1: Linear(len(Ks)*Co, 1)
    w_fc = jax.random.normal(k_fc, (NCO, C), jnp.float32) * 0.1
    b_fc = jax.random.normal(k_bfc, (1, C), jnp.float32) * 0.1

    # ---- one-time host-side parameter packing (deploy-time transform) -----
    # per-tap packed conv weights: wtaps[k, :, j*CO+c] = W_{KS[j]}[k, :, c],
    # zero for taps k >= KS[j] (shorter kernels contribute nothing there).
    wtaps = np.zeros((KMAX, D, NCO), np.float32)
    for j, (K, w) in enumerate(zip(KS, conv_ws)):
        wtaps[:K, :, j * CO:(j + 1) * CO] = np.asarray(w)
    wtaps_bf16 = jnp.asarray(wtaps).astype(jnp.bfloat16)       # (KMAX, D, NCO)
    bias_p = jnp.concatenate(conv_bs).reshape(1, NCO)          # (1, NCO)
    wfc_row = w_fc.T                                           # (1, NCO)

    emb_bf16 = emb_matrix.astype(jnp.bfloat16)                 # MXU operand
    emb_used = emb_bf16.astype(jnp.float32)                    # reference uses same rounding

    logit = cnn_glove_forward(x_ids, emb_bf16, wtaps_bf16, bias_p, wfc_row, b_fc)
    jax.block_until_ready(logit)

    ref = reference_forward(emb_used, x_ids, conv_ws, conv_bs, w_fc, b_fc)
    assert logit.shape == (B,)
    assert jnp.allclose(logit, ref, atol=2e-2, rtol=2e-2), (logit, ref)

    print("KERNEL_OK")
</pallas_src>

<mosaic_0001>
module attributes {stable_mosaic.version = 11 : i64} {
  func.func @cnn_glove_kernel(%arg0: i32, %arg1: memref<1x32x1xi32, #tpu.memory_space<vmem>>, %arg2: memref<50x300xbf16, #tpu.memory_space<vmem>>, %arg3: memref<5x300x24xbf16, #tpu.memory_space<vmem>>, %arg4: memref<1x24xf32, #tpu.memory_space<vmem>>, %arg5: memref<32x24xf32, #tpu.memory_space<vmem>>, %arg6: memref<1x24xf32, #tpu.memory_space<vmem>>, %arg7: memref<1x1xf32, #tpu.memory_space<vmem>>, %arg8: memref<1x2xf32, #tpu.memory_space<vmem>>) attributes {dimension_semantics = [#tpu.dimension_semantics<parallel>], iteration_bounds = array<i64: 1>, scalar_prefetch = 0 : i64, scratch_operands = 0 : i64, tpu.core_type = #tpu.core_type<tc>, window_params = [{transform_indices = @transform_0, window_bounds = array<i64: 1, 32, 1>}, {pipeline_mode = #tpu.pipeline_mode<synchronous>, transform_indices = @transform_1, window_bounds = array<i64: 50, 300>}, {pipeline_mode = #tpu.pipeline_mode<synchronous>, transform_indices = @transform_2, window_bounds = array<i64: 5, 300, 24>}, {pipeline_mode = #tpu.pipeline_mode<synchronous>, transform_indices = @transform_3, window_bounds = array<i64: 1, 24>}, {pipeline_mode = #tpu.pipeline_mode<synchronous>, transform_indices = @transform_4, window_bounds = array<i64: 32, 24>}, {pipeline_mode = #tpu.pipeline_mode<synchronous>, transform_indices = @transform_5, window_bounds = array<i64: 1, 24>}, {pipeline_mode = #tpu.pipeline_mode<synchronous>, transform_indices = @transform_6, window_bounds = array<i64: 1, 1>}, {transform_indices = @transform_7, window_bounds = array<i64: 1, 2>}]} {
    %c0 = arith.constant 0 : index
    %c0_0 = arith.constant 0 : index
    %c0_1 = arith.constant 0 : index
    %0 = vector.load %arg1[%c0, %c0_0, %c0_1] : memref<1x32x1xi32, #tpu.memory_space<vmem>>, vector<1x32x1xi32>
    %1 = vector.shape_cast %0 : vector<1x32x1xi32> to vector<32x1xi32>
    %2 = tpu.iota {dimensions = array<i32: 1>} : vector<32x50xi32>
    %3 = vector.broadcast %1 : vector<32x1xi32> to vector<32x50xi32>
    %4 = arith.cmpi eq, %3, %2 : vector<32x50xi32>
    %5 = arith.extui %4 : vector<32x50xi1> to vector<32x50xi32>
    %6 = arith.sitofp %5 : vector<32x50xi32> to vector<32x50xf32>
    %7 = arith.truncf %6 : vector<32x50xf32> to vector<32x50xbf16>
    %c0_2 = arith.constant 0 : index
    %c0_3 = arith.constant 0 : index
    %8 = vector.load %arg2[%c0_2, %c0_3] : memref<50x300xbf16, #tpu.memory_space<vmem>>, vector<50x300xbf16>
    %cst = arith.constant dense<0.000000e+00> : vector<32x300xf32>
    %9 = tpu.matmul %7, %8, %cst {dimension_numbers = #tpu.dot_dimension_numbers<[1], [0], [0], [1], [0, 0, 1, 1], [], []>} : vector<32x50xbf16>, vector<50x300xbf16>, vector<32x300xf32> -> vector<32x300xf32>
    %10 = arith.truncf %9 : vector<32x300xf32> to vector<32x300xbf16>
    %c0_4 = arith.constant 0 : index
    %c0_5 = arith.constant 0 : index
    %c0_6 = arith.constant 0 : index
    %11 = vector.load %arg3[%c0_4, %c0_5, %c0_6] : memref<5x300x24xbf16, #tpu.memory_space<vmem>>, vector<1x300x24xbf16>
    %12 = vector.shape_cast %11 : vector<1x300x24xbf16> to vector<300x24xbf16>
    %cst_7 = arith.constant dense<0.000000e+00> : vector<32x24xf32>
    %13 = tpu.matmul %10, %12, %cst_7 {dimension_numbers = #tpu.dot_dimension_numbers<[1], [0], [0], [1], [0, 0, 1, 1], [], []>} : vector<32x300xbf16>, vector<300x24xbf16>, vector<32x24xf32> -> vector<32x24xf32>
    %c1 = arith.constant 1 : index
    %c0_8 = arith.constant 0 : index
    %c0_9 = arith.constant 0 : index
    %14 = vector.load %arg3[%c1, %c0_8, %c0_9] : memref<5x300x24xbf16, #tpu.memory_space<vmem>>, vector<1x300x24xbf16>
    %15 = vector.shape_cast %14 : vector<1x300x24xbf16> to vector<300x24xbf16>
    %cst_10 = arith.constant dense<0.000000e+00> : vector<32x24xf32>
    %16 = tpu.matmul %10, %15, %cst_10 {dimension_numbers = #tpu.dot_dimension_numbers<[1], [0], [0], [1], [0, 0, 1, 1], [], []>} : vector<32x300xbf16>, vector<300x24xbf16>, vector<32x24xf32> -> vector<32x24xf32>
    %17 = vector.extract_strided_slice %16 {offsets = [1, 0], sizes = [31, 24], strides = [1, 1]} : vector<32x24xf32> to vector<31x24xf32>
    %18 = vector.extract_strided_slice %16 {offsets = [0, 0], sizes = [1, 24], strides = [1, 1]} : vector<32x24xf32> to vector<1x24xf32>
    %cst_11 = arith.constant 0.000000e+00 : f32
    %19 = vector.broadcast %cst_11 : f32 to vector<1x24xf32>
    %20 = arith.mulf %18, %19 : vector<1x24xf32>
    %21 = tpu.concatenate %17, %20 in 0 : vector<31x24xf32>, vector<1x24xf32> -> vector<32x24xf32>
    %22 = arith.addf %13, %21 : vector<32x24xf32>
    %c2 = arith.constant 2 : index
    %c0_12 = arith.constant 0 : index
    %c0_13 = arith.constant 0 : index
    %23 = vector.load %arg3[%c2, %c0_12, %c0_13] : memref<5x300x24xbf16, #tpu.memory_space<vmem>>, vector<1x300x24xbf16>
    %24 = vector.shape_cast %23 : vector<1x300x24xbf16> to vector<300x24xbf16>
    %cst_14 = arith.constant dense<0.000000e+00> : vector<32x24xf32>
    %25 = tpu.matmul %10, %24, %cst_14 {dimension_numbers = #tpu.dot_dimension_numbers<[1], [0], [0], [1], [0, 0, 1, 1], [], []>} : vector<32x300xbf16>, vector<300x24xbf16>, vector<32x24xf32> -> vector<32x24xf32>
    %26 = vector.extract_strided_slice %25 {offsets = [2, 0], sizes = [30, 24], strides = [1, 1]} : vector<32x24xf32> to vector<30x24xf32>
    %27 = vector.extract_strided_slice %25 {offsets = [0, 0], sizes = [2, 24], strides = [1, 1]} : vector<32x24xf32> to vector<2x24xf32>
    %cst_15 = arith.constant 0.000000e+00 : f32
    %28 = vector.broadcast %cst_15 : f32 to vector<2x24xf32>
    %29 = arith.mulf %27, %28 : vector<2x24xf32>
    %30 = tpu.concatenate %26, %29 in 0 : vector<30x24xf32>, vector<2x24xf32> -> vector<32x24xf32>
    %31 = arith.addf %22, %30 : vector<32x24xf32>
    %c3 = arith.constant 3 : index
    %c0_16 = arith.constant 0 : index
    %c0_17 = arith.constant 0 : index
    %32 = vector.load %arg3[%c3, %c0_16, %c0_17] : memref<5x300x24xbf16, #tpu.memory_space<vmem>>, vector<1x300x24xbf16>
    %33 = vector.shape_cast %32 : vector<1x300x24xbf16> to vector<300x24xbf16>
    %cst_18 = arith.constant dense<0.000000e+00> : vector<32x24xf32>
    %34 = tpu.matmul %10, %33, %cst_18 {dimension_numbers = #tpu.dot_dimension_numbers<[1], [0], [0], [1], [0, 0, 1, 1], [], []>} : vector<32x300xbf16>, vector<300x24xbf16>, vector<32x24xf32> -> vector<32x24xf32>
    %35 = vector.extract_strided_slice %34 {offsets = [3, 0], sizes = [29, 24], strides = [1, 1]} : vector<32x24xf32> to vector<29x24xf32>
    %36 = vector.extract_strided_slice %34 {offsets = [0, 0], sizes = [3, 24], strides = [1, 1]} : vector<32x24xf32> to vector<3x24xf32>
    %cst_19 = arith.constant 0.000000e+00 : f32
    %37 = vector.broadcast %cst_19 : f32 to vector<3x24xf32>
    %38 = arith.mulf %36, %37 : vector<3x24xf32>
    %39 = tpu.concatenate %35, %38 in 0 : vector<29x24xf32>, vector<3x24xf32> -> vector<32x24xf32>
    %40 = arith.addf %31, %39 : vector<32x24xf32>
    %c4 = arith.constant 4 : index
    %c0_20 = arith.constant 0 : index
    %c0_21 = arith.constant 0 : index
    %41 = vector.load %arg3[%c4, %c0_20, %c0_21] : memref<5x300x24xbf16, #tpu.memory_space<vmem>>, vector<1x300x24xbf16>
    %42 = vector.shape_cast %41 : vector<1x300x24xbf16> to vector<300x24xbf16>
    %cst_22 = arith.constant dense<0.000000e+00> : vector<32x24xf32>
    %43 = tpu.matmul %10, %42, %cst_22 {dimension_numbers = #tpu.dot_dimension_numbers<[1], [0], [0], [1], [0, 0, 1, 1], [], []>} : vector<32x300xbf16>, vector<300x24xbf16>, vector<32x24xf32> -> vector<32x24xf32>
    %44 = vector.extract_strided_slice %43 {offsets = [4, 0], sizes = [28, 24], strides = [1, 1]} : vector<32x24xf32> to vector<28x24xf32>
    %45 = vector.extract_strided_slice %43 {offsets = [0, 0], sizes = [4, 24], strides = [1, 1]} : vector<32x24xf32> to vector<4x24xf32>
    %cst_23 = arith.constant 0.000000e+00 : f32
    %46 = vector.broadcast %cst_23 : f32 to vector<4x24xf32>
    %47 = arith.mulf %45, %46 : vector<4x24xf32>
    %48 = tpu.concatenate %44, %47 in 0 : vector<28x24xf32>, vector<4x24xf32> -> vector<32x24xf32>
    %49 = arith.addf %40, %48 : vector<32x24xf32>
    %c0_24 = arith.constant 0 : index
    %c0_25 = arith.constant 0 : index
    %50 = vector.load %arg4[%c0_24, %c0_25] : memref<1x24xf32, #tpu.memory_space<vmem>>, vector<1x24xf32>
    %51 = vector.broadcast %50 : vector<1x24xf32> to vector<32x24xf32>
    %52 = arith.addf %49, %51 : vector<32x24xf32>
    %cst_26 = arith.constant 0.000000e+00 : f32
    %53 = vector.broadcast %cst_26 : f32 to vector<32x24xf32>
    %54 = arith.maximumf %52, %53 : vector<32x24xf32>
    %c0_27 = arith.constant 0 : index
    %c0_28 = arith.constant 0 : index
    %55 = vector.load %arg5[%c0_27, %c0_28] : memref<32x24xf32, #tpu.memory_space<vmem>>, vector<32x24xf32>
    %56 = arith.mulf %54, %55 : vector<32x24xf32>
    %57 = vector.shape_cast %56 : vector<32x24xf32> to vector<2x16x24xf32>
    %cst_29 = arith.constant dense<0xFF800000> : vector<2x24xf32>
    %58 = vector.multi_reduction <maximumf>, %57, %cst_29 [1] : vector<2x16x24xf32> to vector<2x24xf32>
    %c0_30 = arith.constant 0 : index
    %c0_31 = arith.constant 0 : index
    %59 = vector.load %arg6[%c0_30, %c0_31] : memref<1x24xf32, #tpu.memory_space<vmem>>, vector<1x24xf32>
    %cst_32 = arith.constant dense<0.000000e+00> : vector<1x2xf32>
    %60 = tpu.matmul %59, %58, %cst_32 {dimension_numbers = #tpu.dot_dimension_numbers<[1], [1], [0], [0], [0, 0, 1, 0], [], []>} : vector<1x24xf32>, vector<2x24xf32>, vector<1x2xf32> -> vector<1x2xf32>
    %c0_33 = arith.constant 0 : index
    %c0_34 = arith.constant 0 : index
    %61 = vector.load %arg7[%c0_33, %c0_34] : memref<1x1xf32, #tpu.memory_space<vmem>>, vector<1x1xf32>
    %62 = vector.broadcast %61 : vector<1x1xf32> to vector<1x2xf32>
    %63 = arith.addf %60, %62 : vector<1x2xf32>
    %c0_35 = arith.constant 0 : index
    %c0_36 = arith.constant 0 : index
    %64 = vector.load %arg8[%c0_35, %c0_36] : memref<1x2xf32, #tpu.memory_space<vmem>>, vector<1x2xf32>
    tpu.vector_store %arg8[%c0_35, %c0_36], %63 {strides = array<i32>} : memref<1x2xf32, #tpu.memory_space<vmem>>, vector<1x2xf32>,
    return
  }
  func.func @transform_0(%arg0: i32) -> (i32, i32, i32) {
    %c0_i32 = arith.constant 0 : i32
    %c0_i32_0 = arith.constant 0 : i32
    %c0_i32_1 = arith.constant 0 : i32
    return %arg0, %c0_i32, %c0_i32_0 : i32, i32, i32
  }
  func.func @transform_1(%arg0: i32) -> (i32, i32) {
    %c0_i32 = arith.constant 0 : i32
    %c0_i32_0 = arith.constant 0 : i32
    %c0_i32_1 = arith.constant 0 : i32
    return %c0_i32, %c0_i32_0 : i32, i32
  }
  func.func @transform_2(%arg0: i32) -> (i32, i32, i32) {
    %c0_i32 = arith.constant 0 : i32
    %c0_i32_0 = arith.constant 0 : i32
    %c0_i32_1 = arith.constant 0 : i32
    %c0_i32_2 = arith.constant 0 : i32
    return %c0_i32, %c0_i32_0, %c0_i32_1 : i32, i32, i32
  }
  func.func @transform_3(%arg0: i32) -> (i32, i32) {
    %c0_i32 = arith.constant 0 : i32
    %c0_i32_0 = arith.constant 0 : i32
    %c0_i32_1 = arith.constant 0 : i32
    return %c0_i32, %c0_i32_0 : i32, i32
  }
  func.func @transform_4(%arg0: i32) -> (i32, i32) {
    %c0_i32 = arith.constant 0 : i32
    %c0_i32_0 = arith.constant 0 : i32
    %c0_i32_1 = arith.constant 0 : i32
    return %c0_i32, %c0_i32_0 : i32, i32
  }
  func.func @transform_5(%arg0: i32) -> (i32, i32) {
    %c0_i32 = arith.constant 0 : i32
    %c0_i32_0 = arith.constant 0 : i32
    %c0_i32_1 = arith.constant 0 : i32
    return %c0_i32, %c0_i32_0 : i32, i32
  }
  func.func @transform_6(%arg0: i32) -> (i32, i32) {
    %c0_i32 = arith.constant 0 : i32
    %c0_i32_0 = arith.constant 0 : i32
    %c0_i32_1 = arith.constant 0 : i32
    return %c0_i32, %c0_i32_0 : i32, i32
  }
  func.func @transform_7(%arg0: i32) -> (i32, i32) {
    %c0_i32 = arith.constant 0 : i32
    %c0_i32_0 = arith.constant 0 : i32
    return %arg0, %c0_i32 : i32, i32
  }
}

</mosaic_0001>

<llo_original>
// kernel: tpu_custom_call.1
$region0: #{tpu_custom_call.1}
  #allocation0 [shape = 'u32[]', space=smem, size = 0x4, offset = 0x4, fixed_abs, tag = 'smem constant byte address 0x4 - core index']
  #allocation1 [shape = 'u32[72,128]{1,0:T(1,128)}', space=vmem, size = 0x9000, scoped, tag = 'internal scratch']
  #allocation2 [shape = 'f32[1,1]{1,0:T(1,128)S(1)}', space=vmem, size = 0x200, scoped, tag = 'scoped memory for tpu_custom_call.1']
  %s0 = inlined_call_operand.vmem [shape: s32[1,32,1], index: 0, kind: input, shape index: {}]
  %s1 = inlined_call_operand.vmem [shape: bf16[50,300], index: 1, kind: input, shape index: {}]
  %s2 = inlined_call_operand.vmem [shape: bf16[5,300,24], index: 2, kind: input, shape index: {}]
  %s3 = inlined_call_operand.vmem [shape: f32[1,24], index: 3, kind: input, shape index: {}]
  %s4 = inlined_call_operand.vmem [shape: f32[32,24], index: 4, kind: input, shape index: {}]
  %s5 = inlined_call_operand.vmem [shape: f32[1,24], index: 5, kind: input, shape index: {}]
  %s6 = inlined_call_operand.<no memory space> [shape: f32[1,1], index: 6, kind: input, shape index: {}]
  %s7 = inlined_call_operand.hbm [shape: f32[1,2], index: 7, kind: output, shape index: {}]
  %s8 = sld [smem:[#allocation0]]
  $region38: #{tpu_custom_call.1} parent=0
    _
  %s10 = ssub.s32 1, %s8
  %s11 = scalar_select 0, %s10, %s8
  %v12 = vstv %s6
  %13 = vst [vmem:[#allocation2] sm:$0x1] %v12
  $region1: #{tpu_custom_call.1} parent=0
    #allocation3 [shape = 'u8[512]{0}', space=vmem, size = 0x400, scoped, tag = 'output window, operand 0, single buffered']
    #allocation4 [shape = 's32[1]{0}', space=sflag, size = 0x4, scoped, tag = 'scoped memory for tpu_custom_call.1']
    %14 = vsyncpa [#allocation4], 0
    // Predicated region
    $region2: #{tpu_custom_call.1} parent=1 // pred_check
      _
    $region3: #{tpu_custom_call.1} parent=1 // pred_check_branch
      %16 = sbr.rel (0) target = $region5
    $region4: #{tpu_custom_call.1} parent=1 // pred_region
      _
    $region5: #{tpu_custom_call.1} parent=1 // pred_fallthru
      _
    // Predicated region
    $region6: #{tpu_custom_call.1} parent=1 // pred_check
      _
    $region7: #{tpu_custom_call.1} parent=1 // pred_check_branch
      %18 = sbr.rel (0) target = $region9
    $region8: #{tpu_custom_call.1} parent=1 // pred_region
      _
    $region9: #{tpu_custom_call.1} parent=1 // pred_fallthru
      _
    // Predicated region
    $region10: #{tpu_custom_call.1} parent=1 // pred_check
      _
    $region11: #{tpu_custom_call.1} parent=1 // pred_check_branch
      %20 = sbr.rel (0) target = $region13
    $region12: #{tpu_custom_call.1} parent=1 // pred_region
      _
    $region13: #{tpu_custom_call.1} parent=1 // pred_fallthru
      _
    // Predicated region
    $region14: #{tpu_custom_call.1} parent=1 // pred_check
      _
    $region15: #{tpu_custom_call.1} parent=1 // pred_check_branch
      %22 = sbr.rel (0) target = $region17
    $region16: #{tpu_custom_call.1} parent=1 // pred_region
      _
    $region17: #{tpu_custom_call.1} parent=1 // pred_fallthru
      _
    // Predicated region
    $region18: #{tpu_custom_call.1} parent=1 // pred_check
      _
    $region19: #{tpu_custom_call.1} parent=1 // pred_check_branch
      %24 = sbr.rel (0) target = $region21
    $region20: #{tpu_custom_call.1} parent=1 // pred_region
      _
    $region21: #{tpu_custom_call.1} parent=1 // pred_fallthru
      _
    // Predicated region
    $region22: #{tpu_custom_call.1} parent=1 // pred_check
      _
    $region23: #{tpu_custom_call.1} parent=1 // pred_check_branch
      %26 = sbr.rel (0) target = $region25
    $region24: #{tpu_custom_call.1} parent=1 // pred_region
      _
    $region25: #{tpu_custom_call.1} parent=1 // pred_fallthru
      _
    // Predicated region
    $region26: #{tpu_custom_call.1} parent=1 // pred_check
      _
    $region27: #{tpu_custom_call.1} parent=1 // pred_check_branch
      %28 = sbr.rel (0) target = $region29
    $region28: #{tpu_custom_call.1} parent=1 // pred_region
      _
    $region29: #{tpu_custom_call.1} parent=1 // pred_fallthru
      _
    %v30 = vld [vmem:[%s0] sm:$0xff]
    %v31 = vld [vmem:[%s0 + $0x8] sm:$0xff]
    %v32 = vld [vmem:[%s0 + $0x10] sm:$0xff]
    %v33 = vld [vmem:[%s0 + $0x18] sm:$0xff]
    %v34 = vlaneseq
    %v35 = vand.u32 %v34, 127
    %36 = vset.pattern.permute.xlu0 0
    %37 = vperm.xlu0 %36, %v30
    %v38 = vpop.permute.xlu0 %37
    %39 = vset.pattern.permute.xlu0 0
    %40 = vperm.xlu0 %39, %v31
    %v41 = vpop.permute.xlu0 %40
    %42 = vset.pattern.permute.xlu0 0
    %43 = vperm.xlu0 %42, %v32
    %v44 = vpop.permute.xlu0 %43
    %45 = vset.pattern.permute.xlu0 0
    %46 = vperm.xlu0 %45, %v33
    %v47 = vpop.permute.xlu0 %46
    %vm48 = vcmp.eq.s32.totalorder %v38, %v35
    %vm49 = vcmp.eq.s32.totalorder %v41, %v35
    %vm50 = vcmp.eq.s32.totalorder %v44, %v35
    %vm51 = vcmp.eq.s32.totalorder %v47, %v35
    %v52 = vsel %vm48, 1, 0
    %v53 = vsel %vm49, 1, 0
    %v54 = vsel %vm50, 1, 0
    %v55 = vsel %vm51, 1, 0
    %v56 = vcvt.s32.f32 %v52
    %v57 = vcvt.s32.f32 %v53
    %v58 = vcvt.s32.f32 %v54
    %v59 = vcvt.s32.f32 %v55
    %v60 = vpack.c.bf16 %v57, %v56
    %v61 = vpack.c.bf16 %v59, %v58
    %v62 = vld [vmem:[%s1] sm:$0xff]
    %v63 = vld [vmem:[%s1 + $0x8] sm:$0xf]
    %v64 = vld [vmem:[%s1 + $0xc] sm:$0xff]
    %v65 = vld [vmem:[%s1 + $0x14] sm:$0xf]
    %v66 = vld [vmem:[%s1 + $0x18] sm:$0xff]
    %v67 = vld [vmem:[%s1 + $0x20] sm:$0xf]
    %v68 = vld [vmem:[%s1 + $0x24] sm:$0xff]
    %v69 = vld [vmem:[%s1 + $0x2c] sm:$0xf]
    %v70 = vld [vmem:[%s1 + $0x30] sm:$0xff]
    %v71 = vld [vmem:[%s1 + $0x38] sm:$0xf]
    %v72 = vld [vmem:[%s1 + $0x3c] sm:$0xff]
    %v73 = vld [vmem:[%s1 + $0x44] sm:$0xf]
    %v74 = vld [vmem:[%s1 + $0x48] sm:$0x11]
    %v75 = vld [vmem:[%s1 + $0x50] sm:$0x1]
    %v90 = vunpack.c.l.b16 %v62
    %v91 = vunpack.c.h.b16 %v62
    %v92 = vunpack.c.l.b16 %v63
    %v93 = vunpack.c.l.b16 %v64
    %v94 = vunpack.c.h.b16 %v64
    %v95 = vunpack.c.l.b16 %v65
    %v96 = vunpack.c.l.b16 %v66
    %v97 = vunpack.c.h.b16 %v66
    %v98 = vunpack.c.l.b16 %v67
    %v99 = vunpack.c.l.b16 %v68
    %v100 = vunpack.c.h.b16 %v68
    %v101 = vunpack.c.l.b16 %v69
    %v102 = vunpack.c.l.b16 %v70
    %v103 = vunpack.c.h.b16 %v70
    %v104 = vunpack.c.l.b16 %v71
    %v105 = vunpack.c.l.b16 %v72
    %v106 = vunpack.c.h.b16 %v72
    %v107 = vunpack.c.l.b16 %v73
    %v108 = vunpack.c.l.b16 %v74
    %v109 = vunpack.c.h.b16 %v74
    %v110 = vunpack.c.l.b16 %v75
    %v111 = vpack.c.b16 %v93, %v90
    %v112 = vpack.c.b16 %v94, %v91
    %v113 = vpack.c.b16 %v95, %v92
    %v114 = vpack.c.b16 %v99, %v96
    %v115 = vpack.c.b16 %v100, %v97
    %v116 = vpack.c.b16 %v101, %v98
    %v117 = vpack.c.b16 %v105, %v102
    %v118 = vpack.c.b16 %v106, %v103
    %v119 = vpack.c.b16 %v107, %v104
    %v120 = vpack.c.b16 %v108, %v108
    %v121 = vpack.c.b16 %v109, %v109
    %v122 = vpack.c.b16 %v110, %v110
    %vm132 = vcmask 408576
    %v134 = vsel %vm132, %v60, 0
    %v137 = vsel %vm132, %v61, 0
    %vm139 = vcmask 1040384
    %v141 = vsel %vm139, %v120, 0
    %v144 = vsel %vm139, %v121, 0
    %v147 = vsel %vm139, %v122, 0
    %149 = vmatpush.bf16.msra.mxu0 0
    %150 = vmatpush.bf16.msra.mxu0 0
    %151 = vmatpush.bf16.msra.mxu0 0
    %152 = vmatpush.bf16.msra.mxu0 0
    %153 = vmatpush.bf16.msra.mxu0 %v141
    %154 = vmatpush.bf16.msra.mxu0 %v117
    %155 = vmatpush.bf16.msra.mxu0 %v114
    %156 = vmatpush.bf16.msra.mxu0 %v111
    %157 = vmatmul.bf16.gmra.mxu0 %v134
    %v158 = vpop.f32.mrf.mxu0
    %v159 = vadd.f32 0.0, %v158
    %v160 = vpop.f32.mrf.mxu0
    %v161 = vadd.f32 0.0, %v160
    %162 = vmatmul.bf16.gmra.mxu0 %v137
    %v163 = vpop.f32.mrf.mxu0
    %v164 = vadd.f32 0.0, %v163
    %v165 = vpop.f32.mrf.mxu0
    %v166 = vadd.f32 0.0, %v165
    %167 = vdwg.mxu0
    %168 = vmatpush.bf16.msra.mxu0 0
    %169 = vmatpush.bf16.msra.mxu0 0
    %170 = vmatpush.bf16.msra.mxu0 0
    %171 = vmatpush.bf16.msra.mxu0 0
    %172 = vmatpush.bf16.msra.mxu0 %v144
    %173 = vmatpush.bf16.msra.mxu0 %v118
    %174 = vmatpush.bf16.msra.mxu0 %v115
    %175 = vmatpush.bf16.msra.mxu0 %v112
    %176 = vmatmul.bf16.gmra.mxu0 %v134
    %v177 = vpop.f32.mrf.mxu0
    %v178 = vadd.f32 0.0, %v177
    %v179 = vpop.f32.mrf.mxu0
    %v180 = vadd.f32 0.0, %v179
    %181 = vmatmul.bf16.gmra.mxu0 %v137
    %v182 = vpop.f32.mrf.mxu0
    %v183 = vadd.f32 0.0, %v182
    %v184 = vpop.f32.mrf.mxu0
    %v185 = vadd.f32 0.0, %v184
    %186 = vdwg.mxu0
    %187 = vmatpush.bf16.msra.mxu0 0
    %188 = vmatpush.bf16.msra.mxu0 0
    %189 = vmatpush.bf16.msra.mxu0 0
    %190 = vmatpush.bf16.msra.mxu0 0
    %191 = vmatpush.bf16.msra.mxu0 %v147
    %192 = vmatpush.bf16.msra.mxu0 %v119
    %193 = vmatpush.bf16.msra.mxu0 %v116
    %194 = vmatpush.bf16.msra.mxu0 %v113
    %195 = vmatmul.bf16.gmra.mxu0 %v134
    %v196 = vpop.f32.mrf.mxu0
    %v197 = vadd.f32 0.0, %v196
    %v198 = vpop.f32.mrf.mxu0
    %v199 = vadd.f32 0.0, %v198
    %200 = vmatmul.bf16.gmra.mxu0 %v137
    %v201 = vpop.f32.mrf.mxu0
    %v202 = vadd.f32 0.0, %v201
    %v203 = vpop.f32.mrf.mxu0
    %v204 = vadd.f32 0.0, %v203
    %205 = vdwg.mxu0
    %v206 = vpack.c.bf16 %v161, %v159
    %v207 = vpack.c.bf16 %v180, %v178
    %v208 = vpack.c.bf16 %v199, %v197
    %v209 = vpack.c.bf16 %v166, %v164
    %v210 = vpack.c.bf16 %v185, %v183
    %v211 = vpack.c.bf16 %v204, %v202
    %v212 = vld [vmem:[%s2] sm:$0xf]
    %v213 = vld [vmem:[%s2 + $0x4] sm:$0xf]
    %v214 = vld [vmem:[%s2 + $0x8] sm:$0xf]
    %v215 = vld [vmem:[%s2 + $0xc] sm:$0xf]
    %v216 = vld [vmem:[%s2 + $0x10] sm:$0xf]
    %v217 = vld [vmem:[%s2 + $0x14] sm:$0xf]
    %v218 = vld [vmem:[%s2 + $0x18] sm:$0xf]
    %v219 = vld [vmem:[%s2 + $0x1c] sm:$0xf]
    %v220 = vld [vmem:[%s2 + $0x20] sm:$0xf]
    %v221 = vld [vmem:[%s2 + $0x24] sm:$0xf]
    %v222 = vld [vmem:[%s2 + $0x28] sm:$0xf]
    %v223 = vld [vmem:[%s2 + $0x2c] sm:$0xf]
    %v224 = vld [vmem:[%s2 + $0x30] sm:$0xf]
    %v225 = vld [vmem:[%s2 + $0x34] sm:$0xf]
    %v226 = vld [vmem:[%s2 + $0x38] sm:$0xf]
    %v227 = vld [vmem:[%s2 + $0x3c] sm:$0xf]
    %v228 = vld [vmem:[%s2 + $0x40] sm:$0xf]
    %v229 = vld [vmem:[%s2 + $0x44] sm:$0xf]
    %v230 = vld [vmem:[%s2 + $0x48] sm:$0xf]
    %v231 = vld [vmem:[%s2 + $0x4c] sm:$0xf]
    %v232 = vld [vmem:[%s2 + $0x50] sm:$0xf]
    %v233 = vld [vmem:[%s2 + $0x54] sm:$0xf]
    %v234 = vld [vmem:[%s2 + $0x58] sm:$0xf]
    %v235 = vld [vmem:[%s2 + $0x5c] sm:$0xf]
    %v236 = vld [vmem:[%s2 + $0x60] sm:$0xf]
    %v237 = vld [vmem:[%s2 + $0x64] sm:$0xf]
    %v238 = vld [vmem:[%s2 + $0x68] sm:$0xf]
    %v239 = vld [vmem:[%s2 + $0x6c] sm:$0xf]
    %v240 = vld [vmem:[%s2 + $0x70] sm:$0xf]
    %v241 = vld [vmem:[%s2 + $0x74] sm:$0xf]
    %v242 = vld [vmem:[%s2 + $0x78] sm:$0xf]
    %v243 = vld [vmem:[%s2 + $0x7c] sm:$0xf]
    %v244 = vld [vmem:[%s2 + $0x80] sm:$0xf]
    %v245 = vld [vmem:[%s2 + $0x84] sm:$0xf]
    %v246 = vld [vmem:[%s2 + $0x88] sm:$0xf]
    %v247 = vld [vmem:[%s2 + $0x8c] sm:$0xf]
    %v248 = vld [vmem:[%s2 + $0x90] sm:$0xf]
    %v249 = vld [vmem:[%s2 + $0x94] sm:$0x3]
    %s250 = scalar_lea.vmem %s2, 152
    %v251 = vld [vmem:[%s250] sm:$0xf]
    %v252 = vld [vmem:[%s250 + $0x4] sm:$0xf]
    %v253 = vld [vmem:[%s250 + $0x8] sm:$0xf]
    %v254 = vld [vmem:[%s250 + $0xc] sm:$0xf]
    %v255 = vld [vmem:[%s250 + $0x10] sm:$0xf]
    %v256 = vld [vmem:[%s250 + $0x14] sm:$0xf]
    %v257 = vld [vmem:[%s250 + $0x18] sm:$0xf]
    %v258 = vld [vmem:[%s250 + $0x1c] sm:$0xf]
    %v259 = vld [vmem:[%s250 + $0x20] sm:$0xf]
    %v260 = vld [vmem:[%s250 + $0x24] sm:$0xf]
    %v261 = vld [vmem:[%s250 + $0x28] sm:$0xf]
    %v262 = vld [vmem:[%s250 + $0x2c] sm:$0xf]
    %v263 = vld [vmem:[%s250 + $0x30] sm:$0xf]
    %v264 = vld [vmem:[%s250 + $0x34] sm:$0xf]
    %v265 = vld [vmem:[%s250 + $0x38] sm:$0xf]
    %v266 = vld [vmem:[%s250 + $0x3c] sm:$0xf]
    %v267 = vld [vmem:[%s250 + $0x40] sm:$0xf]
    %v268 = vld [vmem:[%s250 + $0x44] sm:$0xf]
    %v269 = vld [vmem:[%s250 + $0x48] sm:$0xf]
    %v270 = vld [vmem:[%s250 + $0x4c] sm:$0xf]
    %v271 = vld [vmem:[%s250 + $0x50] sm:$0xf]
    %v272 = vld [vmem:[%s250 + $0x54] sm:$0xf]
    %v273 = vld [vmem:[%s250 + $0x58] sm:$0xf]
    %v274 = vld [vmem:[%s250 + $0x5c] sm:$0xf]
    %v275 = vld [vmem:[%s250 + $0x60] sm:$0xf]
    %v276 = vld [vmem:[%s250 + $0x64] sm:$0xf]
    %v277 = vld [vmem:[%s250 + $0x68] sm:$0xf]
    %v278 = vld [vmem:[%s250 + $0x6c] sm:$0xf]
    %v279 = vld [vmem:[%s250 + $0x70] sm:$0xf]
    %v280 = vld [vmem:[%s250 + $0x74] sm:$0xf]
    %v281 = vld [vmem:[%s250 + $0x78] sm:$0xf]
    %v282 = vld [vmem:[%s250 + $0x7c] sm:$0xf]
    %v283 = vld [vmem:[%s250 + $0x80] sm:$0xf]
    %v284 = vld [vmem:[%s250 + $0x84] sm:$0xf]
    %v285 = vld [vmem:[%s250 + $0x88] sm:$0xf]
    %v286 = vld [vmem:[%s250 + $0x8c] sm:$0xf]
    %v287 = vld [vmem:[%s250 + $0x90] sm:$0xf]
    %v288 = vld [vmem:[%s250 + $0x94] sm:$0x3]
    %v327 = vunpack.c.l.b16 %v251
    %v328 = vunpack.c.l.b16 %v252
    %v329 = vunpack.c.l.b16 %v253
    %v330 = vunpack.c.l.b16 %v254
    %v331 = vunpack.c.l.b16 %v255
    %v332 = vunpack.c.l.b16 %v256
    %v333 = vunpack.c.l.b16 %v257
    %v334 = vunpack.c.l.b16 %v258
    %v335 = vunpack.c.l.b16 %v259
    %v336 = vunpack.c.l.b16 %v260
    %v337 = vunpack.c.l.b16 %v261
    %v338 = vunpack.c.l.b16 %v262
    %v339 = vunpack.c.l.b16 %v263
    %v340 = vunpack.c.l.b16 %v264
    %v341 = vunpack.c.l.b16 %v265
    %v342 = vunpack.c.l.b16 %v266
    %v343 = vunpack.c.l.b16 %v267
    %v344 = vunpack.c.l.b16 %v268
    %v345 = vunpack.c.l.b16 %v269
    %v346 = vunpack.c.l.b16 %v270
    %v347 = vunpack.c.l.b16 %v271
    %v348 = vunpack.c.l.b16 %v272
    %v349 = vunpack.c.l.b16 %v273
    %v350 = vunpack.c.l.b16 %v274
    %v351 = vunpack.c.l.b16 %v275
    %v352 = vunpack.c.l.b16 %v276
    %v353 = vunpack.c.l.b16 %v277
    %v354 = vunpack.c.l.b16 %v278
    %v355 = vunpack.c.l.b16 %v279
    %v356 = vunpack.c.l.b16 %v280
    %v357 = vunpack.c.l.b16 %v281
    %v358 = vunpack.c.l.b16 %v282
    %v359 = vunpack.c.l.b16 %v283
    %v360 = vunpack.c.l.b16 %v284
    %v361 = vunpack.c.l.b16 %v285
    %v362 = vunpack.c.l.b16 %v286
    %v363 = vunpack.c.l.b16 %v287
    %v364 = vunpack.c.l.b16 %v288
    %v365 = vpack.c.b16 %v328, %v327
    %v366 = vpack.c.b16 %v330, %v329
    %v367 = vpack.c.b16 %v332, %v331
    %v368 = vpack.c.b16 %v334, %v333
    %v369 = vpack.c.b16 %v336, %v335
    %v370 = vpack.c.b16 %v338, %v337
    %v371 = vpack.c.b16 %v340, %v339
    %v372 = vpack.c.b16 %v342, %v341
    %v373 = vpack.c.b16 %v344, %v343
    %v374 = vpack.c.b16 %v346, %v345
    %v375 = vpack.c.b16 %v348, %v347
    %v376 = vpack.c.b16 %v350, %v349
    %v377 = vpack.c.b16 %v352, %v351
    %v378 = vpack.c.b16 %v354, %v353
    %v379 = vpack.c.b16 %v356, %v355
    %v380 = vpack.c.b16 %v358, %v357
    %v381 = vpack.c.b16 %v360, %v359
    %v382 = vpack.c.b16 %v362, %v361
    %v383 = vpack.c.b16 %v364, %v363
    %vm402 = vcmask 359424
    %v404 = vsel %vm402, %v208, 0
    %v407 = vsel %vm402, %v211, 0
    %vm409 = vcmask 1045504
    %v411 = vsel %vm409, %v383, 0
    %413 = vmatpush.bf16.msra.mxu0 %v372
    %414 = vmatpush.bf16.msra.mxu0 %v371
    %415 = vmatpush.bf16.msra.mxu0 %v370
    %416 = vmatpush.bf16.msra.mxu0 %v369
    %417 = vmatpush.bf16.msra.mxu0 %v368
    %418 = vmatpush.bf16.msra.mxu0 %v367
    %419 = vmatpush.bf16.msra.mxu0 %v366
    %420 = vmatpush.bf16.msra.mxu0 %v365
    %421 = vmatmul.bf16.gmra.mxu0 %v206
    %v422 = vpop.f32.mrf.mxu0
    %v423 = vadd.f32 0.0, %v422
    %v424 = vpop.f32.mrf.mxu0
    %v425 = vadd.f32 0.0, %v424
    %426 = vmatmul.bf16.gmra.mxu0 %v209
    %v427 = vpop.f32.mrf.mxu0
    %v428 = vadd.f32 0.0, %v427
    %v429 = vpop.f32.mrf.mxu0
    %v430 = vadd.f32 0.0, %v429
    %431 = vdwg.mxu0
    %432 = vmatpush.bf16.msra.mxu0 %v380
    %433 = vmatpush.bf16.msra.mxu0 %v379
    %434 = vmatpush.bf16.msra.mxu0 %v378
    %435 = vmatpush.bf16.msra.mxu0 %v377
    %436 = vmatpush.bf16.msra.mxu0 %v376
    %437 = vmatpush.bf16.msra.mxu0 %v375
    %438 = vmatpush.bf16.msra.mxu0 %v374
    %439 = vmatpush.bf16.msra.mxu0 %v373
    %440 = vmatmul.bf16.gmra.mxu0 %v207
    %v441 = vpop.f32.mrf.mxu0
    %v442 = vadd.f32 %v423, %v441
    %v443 = vpop.f32.mrf.mxu0
    %v444 = vadd.f32 %v425, %v443
    %445 = vmatmul.bf16.gmra.mxu0 %v210
    %v446 = vpop.f32.mrf.mxu0
    %v447 = vadd.f32 %v428, %v446
    %v448 = vpop.f32.mrf.mxu0
    %v449 = vadd.f32 %v430, %v448
    %450 = vdwg.mxu0
    %451 = vmatpush.bf16.msra.mxu0 0
    %452 = vmatpush.bf16.msra.mxu0 0
    %453 = vmatpush.bf16.msra.mxu0 0
    %454 = vmatpush.bf16.msra.mxu0 0
    %455 = vmatpush.bf16.msra.mxu0 0
    %456 = vmatpush.bf16.msra.mxu0 %v411
    %457 = vmatpush.bf16.msra.mxu0 %v382
    %458 = vmatpush.bf16.msra.mxu0 %v381
    %459 = vmatmul.bf16.gmra.mxu0 %v404
    %v460 = vpop.f32.mrf.mxu0
    %v461 = vadd.f32 %v442, %v460
    %v462 = vpop.f32.mrf.mxu0
    %v463 = vadd.f32 %v444, %v462
    %464 = vmatmul.bf16.gmra.mxu0 %v407
    %v465 = vpop.f32.mrf.mxu0
    %v466 = vadd.f32 %v447, %v465
    %v467 = vpop.f32.mrf.mxu0
    %v468 = vadd.f32 %v449, %v467
    %469 = vdwg.mxu0
    %v470 = vmul.f32 %v461, 0.0
    %vm475 = vcmask 1046528
    %v476 = vrot.slane %v461, 1
    %v477 = vrot.slane %v463, 1
    %v478 = vsel %vm475, %v476, %v477
    %v479 = vrot.slane %v466, 1
    %v480 = vsel %vm475, %v477, %v479
    %v481 = vrot.slane %v468, 1
    %v482 = vsel %vm475, %v479, %v481
    %v488 = vrot.slane %v470, 1
    %v490 = vsel %vm475, %v481, %v488
    %v529 = vunpack.c.l.b16 %v212
    %v530 = vunpack.c.l.b16 %v213
    %v531 = vunpack.c.l.b16 %v214
    %v532 = vunpack.c.l.b16 %v215
    %v533 = vunpack.c.l.b16 %v216
    %v534 = vunpack.c.l.b16 %v217
    %v535 = vunpack.c.l.b16 %v218
    %v536 = vunpack.c.l.b16 %v219
    %v537 = vunpack.c.l.b16 %v220
    %v538 = vunpack.c.l.b16 %v221
    %v539 = vunpack.c.l.b16 %v222
    %v540 = vunpack.c.l.b16 %v223
    %v541 = vunpack.c.l.b16 %v224
    %v542 = vunpack.c.l.b16 %v225
    %v543 = vunpack.c.l.b16 %v226
    %v544 = vunpack.c.l.b16 %v227
    %v545 = vunpack.c.l.b16 %v228
    %v546 = vunpack.c.l.b16 %v229
    %v547 = vunpack.c.l.b16 %v230
    %v548 = vunpack.c.l.b16 %v231
    %v549 = vunpack.c.l.b16 %v232
    %v550 = vunpack.c.l.b16 %v233
    %v551 = vunpack.c.l.b16 %v234
    %v552 = vunpack.c.l.b16 %v235
    %v553 = vunpack.c.l.b16 %v236
    %v554 = vunpack.c.l.b16 %v237
    %v555 = vunpack.c.l.b16 %v238
    %v556 = vunpack.c.l.b16 %v239
    %v557 = vunpack.c.l.b16 %v240
    %v558 = vunpack.c.l.b16 %v241
    %v559 = vunpack.c.l.b16 %v242
    %v560 = vunpack.c.l.b16 %v243
    %v561 = vunpack.c.l.b16 %v244
    %v562 = vunpack.c.l.b16 %v245
    %v563 = vunpack.c.l.b16 %v246
    %v564 = vunpack.c.l.b16 %v247
    %v565 = vunpack.c.l.b16 %v248
    %v566 = vunpack.c.l.b16 %v249
    %v567 = vpack.c.b16 %v530, %v529
    %v568 = vpack.c.b16 %v532, %v531
    %v569 = vpack.c.b16 %v534, %v533
    %v570 = vpack.c.b16 %v536, %v535
    %v571 = vpack.c.b16 %v538, %v537
    %v572 = vpack.c.b16 %v540, %v539
    %v573 = vpack.c.b16 %v542, %v541
    %v574 = vpack.c.b16 %v544, %v543
    %v575 = vpack.c.b16 %v546, %v545
    %v576 = vpack.c.b16 %v548, %v547
    %v577 = vpack.c.b16 %v550, %v549
    %v578 = vpack.c.b16 %v552, %v551
    %v579 = vpack.c.b16 %v554, %v553
    %v580 = vpack.c.b16 %v556, %v555
    %v581 = vpack.c.b16 %v558, %v557
    %v582 = vpack.c.b16 %v560, %v559
    %v583 = vpack.c.b16 %v562, %v561
    %v584 = vpack.c.b16 %v564, %v563
    %v585 = vpack.c.b16 %v566, %v565
    %v605 = vsel %vm409, %v585, 0
    %607 = vmatpush.bf16.msra.mxu0 %v574
    %608 = vmatpush.bf16.msra.mxu0 %v573
    %609 = vmatpush.bf16.msra.mxu0 %v572
    %610 = vmatpush.bf16.msra.mxu0 %v571
    %611 = vmatpush.bf16.msra.mxu0 %v570
    %612 = vmatpush.bf16.msra.mxu0 %v569
    %613 = vmatpush.bf16.msra.mxu0 %v568
    %614 = vmatpush.bf16.msra.mxu0 %v567
    %615 = vmatmul.bf16.gmra.mxu0 %v206
    %v616 = vpop.f32.mrf.mxu0
    %v617 = vadd.f32 %v478, %v616
    %v618 = vpop.f32.mrf.mxu0
    %v619 = vadd.f32 %v480, %v618
    %620 = vmatmul.bf16.gmra.mxu0 %v209
    %v621 = vpop.f32.mrf.mxu0
    %v622 = vadd.f32 %v482, %v621
    %v623 = vpop.f32.mrf.mxu0
    %v624 = vadd.f32 %v490, %v623
    %625 = vdwg.mxu0
    %626 = vmatpush.bf16.msra.mxu0 %v582
    %627 = vmatpush.bf16.msra.mxu0 %v581
    %628 = vmatpush.bf16.msra.mxu0 %v580
    %629 = vmatpush.bf16.msra.mxu0 %v579
    %630 = vmatpush.bf16.msra.mxu0 %v578
    %631 = vmatpush.bf16.msra.mxu0 %v577
    %632 = vmatpush.bf16.msra.mxu0 %v576
    %633 = vmatpush.bf16.msra.mxu0 %v575
    %634 = vmatmul.bf16.gmra.mxu0 %v207
    %v635 = vpop.f32.mrf.mxu0
    %v636 = vadd.f32 %v617, %v635
    %v637 = vpop.f32.mrf.mxu0
    %v638 = vadd.f32 %v619, %v637
    %639 = vmatmul.bf16.gmra.mxu0 %v210
    %v640 = vpop.f32.mrf.mxu0
    %v641 = vadd.f32 %v622, %v640
    %v642 = vpop.f32.mrf.mxu0
    %v643 = vadd.f32 %v624, %v642
    %644 = vdwg.mxu0
    %645 = vmatpush.bf16.msra.mxu0 0
    %646 = vmatpush.bf16.msra.mxu0 0
    %647 = vmatpush.bf16.msra.mxu0 0
    %648 = vmatpush.bf16.msra.mxu0 0
    %649 = vmatpush.bf16.msra.mxu0 0
    %650 = vmatpush.bf16.msra.mxu0 %v605
    %651 = vmatpush.bf16.msra.mxu0 %v584
    %652 = vmatpush.bf16.msra.mxu0 %v583
    %653 = vmatmul.bf16.gmra.mxu0 %v404
    %v654 = vpop.f32.mrf.mxu0
    %v655 = vadd.f32 %v636, %v654
    %v656 = vpop.f32.mrf.mxu0
    %v657 = vadd.f32 %v638, %v656
    %658 = vmatmul.bf16.gmra.mxu0 %v407
    %v659 = vpop.f32.mrf.mxu0
    %v660 = vadd.f32 %v641, %v659
    %v661 = vpop.f32.mrf.mxu0
    %v662 = vadd.f32 %v643, %v661
    %663 = vdwg.mxu0
    %s664 = scalar_lea.vmem %s2, 304
    %v665 = vld [vmem:[%s664] sm:$0xf]
    %v666 = vld [vmem:[%s664 + $0x4] sm:$0xf]
    %v667 = vld [vmem:[%s664 + $0x8] sm:$0xf]
    %v668 = vld [vmem:[%s664 + $0xc] sm:$0xf]
    %v669 = vld [vmem:[%s664 + $0x10] sm:$0xf]
    %v670 = vld [vmem:[%s664 + $0x14] sm:$0xf]
    %v671 = vld [vmem:[%s664 + $0x18] sm:$0xf]
    %v672 = vld [vmem:[%s664 + $0x1c] sm:$0xf]
    %v673 = vld [vmem:[%s664 + $0x20] sm:$0xf]
    %v674 = vld [vmem:[%s664 + $0x24] sm:$0xf]
    %v675 = vld [vmem:[%s664 + $0x28] sm:$0xf]
    %v676 = vld [vmem:[%s664 + $0x2c] sm:$0xf]
    %v677 = vld [vmem:[%s664 + $0x30] sm:$0xf]
    %v678 = vld [vmem:[%s664 + $0x34] sm:$0xf]
    %v679 = vld [vmem:[%s664 + $0x38] sm:$0xf]
    %v680 = vld [vmem:[%s664 + $0x3c] sm:$0xf]
    %v681 = vld [vmem:[%s664 + $0x40] sm:$0xf]
    %v682 = vld [vmem:[%s664 + $0x44] sm:$0xf]
    %v683 = vld [vmem:[%s664 + $0x48] sm:$0xf]
    %v684 = vld [vmem:[%s664 + $0x4c] sm:$0xf]
    %v685 = vld [vmem:[%s664 + $0x50] sm:$0xf]
    %v686 = vld [vmem:[%s664 + $0x54] sm:$0xf]
    %v687 = vld [vmem:[%s664 + $0x58] sm:$0xf]
    %v688 = vld [vmem:[%s664 + $0x5c] sm:$0xf]
    %v689 = vld [vmem:[%s664 + $0x60] sm:$0xf]
    %v690 = vld [vmem:[%s664 + $0x64] sm:$0xf]
    %v691 = vld [vmem:[%s664 + $0x68] sm:$0xf]
    %v692 = vld [vmem:[%s664 + $0x6c] sm:$0xf]
    %v693 = vld [vmem:[%s664 + $0x70] sm:$0xf]
    %v694 = vld [vmem:[%s664 + $0x74] sm:$0xf]
    %v695 = vld [vmem:[%s664 + $0x78] sm:$0xf]
    %v696 = vld [vmem:[%s664 + $0x7c] sm:$0xf]
    %v697 = vld [vmem:[%s664 + $0x80] sm:$0xf]
    %v698 = vld [vmem:[%s664 + $0x84] sm:$0xf]
    %v699 = vld [vmem:[%s664 + $0x88] sm:$0xf]
    %v700 = vld [vmem:[%s664 + $0x8c] sm:$0xf]
    %v701 = vld [vmem:[%s664 + $0x90] sm:$0xf]
    %v702 = vld [vmem:[%s664 + $0x94] sm:$0x3]
    %v741 = vunpack.c.l.b16 %v665
    %v742 = vunpack.c.l.b16 %v666
    %v743 = vunpack.c.l.b16 %v667
    %v744 = vunpack.c.l.b16 %v668
    %v745 = vunpack.c.l.b16 %v669
    %v746 = vunpack.c.l.b16 %v670
    %v747 = vunpack.c.l.b16 %v671
    %v748 = vunpack.c.l.b16 %v672
    %v749 = vunpack.c.l.b16 %v673
    %v750 = vunpack.c.l.b16 %v674
    %v751 = vunpack.c.l.b16 %v675
    %v752 = vunpack.c.l.b16 %v676
    %v753 = vunpack.c.l.b16 %v677
    %v754 = vunpack.c.l.b16 %v678
    %v755 = vunpack.c.l.b16 %v679
    %v756 = vunpack.c.l.b16 %v680
    %v757 = vunpack.c.l.b16 %v681
    %v758 = vunpack.c.l.b16 %v682
    %v759 = vunpack.c.l.b16 %v683
    %v760 = vunpack.c.l.b16 %v684
    %v761 = vunpack.c.l.b16 %v685
    %v762 = vunpack.c.l.b16 %v686
    %v763 = vunpack.c.l.b16 %v687
    %v764 = vunpack.c.l.b16 %v688
    %v765 = vunpack.c.l.b16 %v689
    %v766 = vunpack.c.l.b16 %v690
    %v767 = vunpack.c.l.b16 %v691
    %v768 = vunpack.c.l.b16 %v692
    %v769 = vunpack.c.l.b16 %v693
    %v770 = vunpack.c.l.b16 %v694
    %v771 = vunpack.c.l.b16 %v695
    %v772 = vunpack.c.l.b16 %v696
    %v773 = vunpack.c.l.b16 %v697
    %v774 = vunpack.c.l.b16 %v698
    %v775 = vunpack.c.l.b16 %v699
    %v776 = vunpack.c.l.b16 %v700
    %v777 = vunpack.c.l.b16 %v701
    %v778 = vunpack.c.l.b16 %v702
    %v779 = vpack.c.b16 %v742, %v741
    %v780 = vpack.c.b16 %v744, %v743
    %v781 = vpack.c.b16 %v746, %v745
    %v782 = vpack.c.b16 %v748, %v747
    %v783 = vpack.c.b16 %v750, %v749
    %v784 = vpack.c.b16 %v752, %v751
    %v785 = vpack.c.b16 %v754, %v753
    %v786 = vpack.c.b16 %v756, %v755
    %v787 = vpack.c.b16 %v758, %v757
    %v788 = vpack.c.b16 %v760, %v759
    %v789 = vpack.c.b16 %v762, %v761
    %v790 = vpack.c.b16 %v764, %v763
    %v791 = vpack.c.b16 %v766, %v765
    %v792 = vpack.c.b16 %v768, %v767
    %v793 = vpack.c.b16 %v770, %v769
    %v794 = vpack.c.b16 %v772, %v771
    %v795 = vpack.c.b16 %v774, %v773
    %v796 = vpack.c.b16 %v776, %v775
    %v797 = vpack.c.b16 %v778, %v777
    %v817 = vsel %vm409, %v797, 0
    %819 = vmatpush.bf16.msra.mxu0 %v786
    %820 = vmatpush.bf16.msra.mxu0 %v785
    %821 = vmatpush.bf16.msra.mxu0 %v784
    %822 = vmatpush.bf16.msra.mxu0 %v783
    %823 = vmatpush.bf16.msra.mxu0 %v782
    %824 = vmatpush.bf16.msra.mxu0 %v781
    %825 = vmatpush.bf16.msra.mxu0 %v780
    %826 = vmatpush.bf16.msra.mxu0 %v779
    %827 = vmatmul.bf16.gmra.mxu0 %v206
    %v828 = vpop.f32.mrf.mxu0
    %v829 = vadd.f32 0.0, %v828
    %v830 = vpop.f32.mrf.mxu0
    %v831 = vadd.f32 0.0, %v830
    %832 = vmatmul.bf16.gmra.mxu0 %v209
    %v833 = vpop.f32.mrf.mxu0
    %v834 = vadd.f32 0.0, %v833
    %v835 = vpop.f32.mrf.mxu0
    %v836 = vadd.f32 0.0, %v835
    %837 = vdwg.mxu0
    %838 = vmatpush.bf16.msra.mxu0 %v794
    %839 = vmatpush.bf16.msra.mxu0 %v793
    %840 = vmatpush.bf16.msra.mxu0 %v792
    %841 = vmatpush.bf16.msra.mxu0 %v791
    %842 = vmatpush.bf16.msra.mxu0 %v790
    %843 = vmatpush.bf16.msra.mxu0 %v789
    %844 = vmatpush.bf16.msra.mxu0 %v788
    %845 = vmatpush.bf16.msra.mxu0 %v787
    %846 = vmatmul.bf16.gmra.mxu0 %v207
    %v847 = vpop.f32.mrf.mxu0
    %v848 = vadd.f32 %v829, %v847
    %v849 = vpop.f32.mrf.mxu0
    %v850 = vadd.f32 %v831, %v849
    %851 = vmatmul.bf16.gmra.mxu0 %v210
    %v852 = vpop.f32.mrf.mxu0
    %v853 = vadd.f32 %v834, %v852
    %v854 = vpop.f32.mrf.mxu0
    %v855 = vadd.f32 %v836, %v854
    %856 = vdwg.mxu0
    %857 = vmatpush.bf16.msra.mxu0 0
    %858 = vmatpush.bf16.msra.mxu0 0
    %859 = vmatpush.bf16.msra.mxu0 0
    %860 = vmatpush.bf16.msra.mxu0 0
    %861 = vmatpush.bf16.msra.mxu0 0
    %862 = vmatpush.bf16.msra.mxu0 %v817
    %863 = vmatpush.bf16.msra.mxu0 %v796
    %864 = vmatpush.bf16.msra.mxu0 %v795
    %865 = vmatmul.bf16.gmra.mxu0 %v404
    %v866 = vpop.f32.mrf.mxu0
    %v867 = vadd.f32 %v848, %v866
    %v868 = vpop.f32.mrf.mxu0
    %v869 = vadd.f32 %v850, %v868
    %870 = vmatmul.bf16.gmra.mxu0 %v407
    %v871 = vpop.f32.mrf.mxu0
    %v872 = vadd.f32 %v853, %v871
    %v873 = vpop.f32.mrf.mxu0
    %v874 = vadd.f32 %v855, %v873
    %875 = vdwg.mxu0
    %v876 = vmul.f32 %v867, 0.0
    %v881 = vrot.slane %v867, 2
    %v882 = vrot.slane %v869, 2
    %v883 = vsel %vm409, %v881, %v882
    %v884 = vrot.slane %v872, 2
    %v885 = vsel %vm409, %v882, %v884
    %v886 = vrot.slane %v874, 2
    %v887 = vsel %vm409, %v884, %v886
    %v893 = vrot.slane %v876, 2
    %v895 = vsel %vm409, %v886, %v893
    %v896 = vadd.f32 %v655, %v883
    %v897 = vadd.f32 %v657, %v885
    %v898 = vadd.f32 %v660, %v887
    %v899 = vadd.f32 %v662, %v895
    %s900 = scalar_lea.vmem %s2, 456
    %v901 = vld [vmem:[%s900] sm:$0xf]
    %v902 = vld [vmem:[%s900 + $0x4] sm:$0xf]
    %v903 = vld [vmem:[%s900 + $0x8] sm:$0xf]
    %v904 = vld [vmem:[%s900 + $0xc] sm:$0xf]
    %v905 = vld [vmem:[%s900 + $0x10] sm:$0xf]
    %v906 = vld [vmem:[%s900 + $0x14] sm:$0xf]
    %v907 = vld [vmem:[%s900 + $0x18] sm:$0xf]
    %v908 = vld [vmem:[%s900 + $0x1c] sm:$0xf]
    %v909 = vld [vmem:[%s900 + $0x20] sm:$0xf]
    %v910 = vld [vmem:[%s900 + $0x24] sm:$0xf]
    %v911 = vld [vmem:[%s900 + $0x28] sm:$0xf]
    %v912 = vld [vmem:[%s900 + $0x2c] sm:$0xf]
    %v913 = vld [vmem:[%s900 + $0x30] sm:$0xf]
    %v914 = vld [vmem:[%s900 + $0x34] sm:$0xf]
    %v915 = vld [vmem:[%s900 + $0x38] sm:$0xf]
    %v916 = vld [vmem:[%s900 + $0x3c] sm:$0xf]
    %v917 = vld [vmem:[%s900 + $0x40] sm:$0xf]
    %v918 = vld [vmem:[%s900 + $0x44] sm:$0xf]
    %v919 = vld [vmem:[%s900 + $0x48] sm:$0xf]
    %v920 = vld [vmem:[%s900 + $0x4c] sm:$0xf]
    %v921 = vld [vmem:[%s900 + $0x50] sm:$0xf]
    %v922 = vld [vmem:[%s900 + $0x54] sm:$0xf]
    %v923 = vld [vmem:[%s900 + $0x58] sm:$0xf]
    %v924 = vld [vmem:[%s900 + $0x5c] sm:$0xf]
    %v925 = vld [vmem:[%s900 + $0x60] sm:$0xf]
    %v926 = vld [vmem:[%s900 + $0x64] sm:$0xf]
    %v927 = vld [vmem:[%s900 + $0x68] sm:$0xf]
    %v928 = vld [vmem:[%s900 + $0x6c] sm:$0xf]
    %v929 = vld [vmem:[%s900 + $0x70] sm:$0xf]
    %v930 = vld [vmem:[%s900 + $0x74] sm:$0xf]
    %v931 = vld [vmem:[%s900 + $0x78] sm:$0xf]
    %v932 = vld [vmem:[%s900 + $0x7c] sm:$0xf]
    %v933 = vld [vmem:[%s900 + $0x80] sm:$0xf]
    %v934 = vld [vmem:[%s900 + $0x84] sm:$0xf]
    %v935 = vld [vmem:[%s900 + $0x88] sm:$0xf]
    %v936 = vld [vmem:[%s900 + $0x8c] sm:$0xf]
    %v937 = vld [vmem:[%s900 + $0x90] sm:$0xf]
    %v938 = vld [vmem:[%s900 + $0x94] sm:$0x3]
    %v977 = vunpack.c.l.b16 %v901
    %v978 = vunpack.c.l.b16 %v902
    %v979 = vunpack.c.l.b16 %v903
    %v980 = vunpack.c.l.b16 %v904
    %v981 = vunpack.c.l.b16 %v905
    %v982 = vunpack.c.l.b16 %v906
    %v983 = vunpack.c.l.b16 %v907
    %v984 = vunpack.c.l.b16 %v908
    %v985 = vunpack.c.l.b16 %v909
    %v986 = vunpack.c.l.b16 %v910
    %v987 = vunpack.c.l.b16 %v911
    %v988 = vunpack.c.l.b16 %v912
    %v989 = vunpack.c.l.b16 %v913
    %v990 = vunpack.c.l.b16 %v914
    %v991 = vunpack.c.l.b16 %v915
    %v992 = vunpack.c.l.b16 %v916
    %v993 = vunpack.c.l.b16 %v917
    %v994 = vunpack.c.l.b16 %v918
    %v995 = vunpack.c.l.b16 %v919
    %v996 = vunpack.c.l.b16 %v920
    %v997 = vunpack.c.l.b16 %v921
    %v998 = vunpack.c.l.b16 %v922
    %v999 = vunpack.c.l.b16 %v923
    %v1000 = vunpack.c.l.b16 %v924
    %v1001 = vunpack.c.l.b16 %v925
    %v1002 = vunpack.c.l.b16 %v926
    %v1003 = vunpack.c.l.b16 %v927
    %v1004 = vunpack.c.l.b16 %v928
    %v1005 = vunpack.c.l.b16 %v929
    %v1006 = vunpack.c.l.b16 %v930
    %v1007 = vunpack.c.l.b16 %v931
    %v1008 = vunpack.c.l.b16 %v932
    %v1009 = vunpack.c.l.b16 %v933
    %v1010 = vunpack.c.l.b16 %v934
    %v1011 = vunpack.c.l.b16 %v935
    %v1012 = vunpack.c.l.b16 %v936
    %v1013 = vunpack.c.l.b16 %v937
    %v1014 = vunpack.c.l.b16 %v938
    %v1015 = vpack.c.b16 %v978, %v977
    %v1016 = vpack.c.b16 %v980, %v979
    %v1017 = vpack.c.b16 %v982, %v981
    %v1018 = vpack.c.b16 %v984, %v983
    %v1019 = vpack.c.b16 %v986, %v985
    %v1020 = vpack.c.b16 %v988, %v987
    %v1021 = vpack.c.b16 %v990, %v989
    %v1022 = vpack.c.b16 %v992, %v991
    %v1023 = vpack.c.b16 %v994, %v993
    %v1024 = vpack.c.b16 %v996, %v995
    %v1025 = vpack.c.b16 %v998, %v997
    %v1026 = vpack.c.b16 %v1000, %v999
    %v1027 = vpack.c.b16 %v1002, %v1001
    %v1028 = vpack.c.b16 %v1004, %v1003
    %v1029 = vpack.c.b16 %v1006, %v1005
    %v1030 = vpack.c.b16 %v1008, %v1007
    %v1031 = vpack.c.b16 %v1010, %v1009
    %v1032 = vpack.c.b16 %v1012, %v1011
    %v1033 = vpack.c.b16 %v1014, %v1013
    %v1053 = vsel %vm409, %v1033, 0
    %1055 = vmatpush.bf16.msra.mxu0 %v1022
    %1056 = vmatpush.bf16.msra.mxu0 %v1021
    %1057 = vmatpush.bf16.msra.mxu0 %v1020
    %1058 = vmatpush.bf16.msra.mxu0 %v1019
    %1059 = vmatpush.bf16.msra.mxu0 %v1018
    %1060 = vmatpush.bf16.msra.mxu0 %v1017
    %1061 = vmatpush.bf16.msra.mxu0 %v1016
    %1062 = vmatpush.bf16.msra.mxu0 %v1015
    %1063 = vmatmul.bf16.gmra.mxu0 %v206
    %v1064 = vpop.f32.mrf.mxu0
    %v1065 = vadd.f32 0.0, %v1064
    %v1066 = vpop.f32.mrf.mxu0
    %v1067 = vadd.f32 0.0, %v1066
    %1068 = vmatmul.bf16.gmra.mxu0 %v209
    %v1069 = vpop.f32.mrf.mxu0
    %v1070 = vadd.f32 0.0, %v1069
    %v1071 = vpop.f32.mrf.mxu0
    %v1072 = vadd.f32 0.0, %v1071
    %1073 = vdwg.mxu0
    %1074 = vmatpush.bf16.msra.mxu0 %v1030
    %1075 = vmatpush.bf16.msra.mxu0 %v1029
    %1076 = vmatpush.bf16.msra.mxu0 %v1028
    %1077 = vmatpush.bf16.msra.mxu0 %v1027
    %1078 = vmatpush.bf16.msra.mxu0 %v1026
    %1079 = vmatpush.bf16.msra.mxu0 %v1025
    %1080 = vmatpush.bf16.msra.mxu0 %v1024
    %1081 = vmatpush.bf16.msra.mxu0 %v1023
    %1082 = vmatmul.bf16.gmra.mxu0 %v207
    %v1083 = vpop.f32.mrf.mxu0
    %v1084 = vadd.f32 %v1065, %v1083
    %v1085 = vpop.f32.mrf.mxu0
    %v1086 = vadd.f32 %v1067, %v1085
    %1087 = vmatmul.bf16.gmra.mxu0 %v210
    %v1088 = vpop.f32.mrf.mxu0
    %v1089 = vadd.f32 %v1070, %v1088
    %v1090 = vpop.f32.mrf.mxu0
    %v1091 = vadd.f32 %v1072, %v1090
    %1092 = vdwg.mxu0
    %1093 = vmatpush.bf16.msra.mxu0 0
    %1094 = vmatpush.bf16.msra.mxu0 0
    %1095 = vmatpush.bf16.msra.mxu0 0
    %1096 = vmatpush.bf16.msra.mxu0 0
    %1097 = vmatpush.bf16.msra.mxu0 0
    %1098 = vmatpush.bf16.msra.mxu0 %v1053
    %1099 = vmatpush.bf16.msra.mxu0 %v1032
    %1100 = vmatpush.bf16.msra.mxu0 %v1031
    %1101 = vmatmul.bf16.gmra.mxu0 %v404
    %v1102 = vpop.f32.mrf.mxu0
    %v1103 = vadd.f32 %v1084, %v1102
    %v1104 = vpop.f32.mrf.mxu0
    %v1105 = vadd.f32 %v1086, %v1104
    %1106 = vmatmul.bf16.gmra.mxu0 %v407
    %v1107 = vpop.f32.mrf.mxu0
    %v1108 = vadd.f32 %v1089, %v1107
    %v1109 = vpop.f32.mrf.mxu0
    %v1110 = vadd.f32 %v1091, %v1109
    %1111 = vdwg.mxu0
    %v1112 = vmul.f32 %v1103, 0.0
    %vm1117 = vcmask 1044480
    %v1118 = vrot.slane %v1103, 3
    %v1119 = vrot.slane %v1105, 3
    %v1120 = vsel %vm1117, %v1118, %v1119
    %v1121 = vrot.slane %v1108, 3
    %v1122 = vsel %vm1117, %v1119, %v1121
    %v1123 = vrot.slane %v1110, 3
    %v1124 = vsel %vm1117, %v1121, %v1123
    %v1130 = vrot.slane %v1112, 3
    %v1132 = vsel %vm1117, %v1123, %v1130
    %v1133 = vadd.f32 %v896, %v1120
    %v1134 = vadd.f32 %v897, %v1122
    %v1135 = vadd.f32 %v898, %v1124
    %v1136 = vadd.f32 %v899, %v1132
    %s1137 = scalar_lea.vmem %s2, 608
    %v1138 = vld [vmem:[%s1137] sm:$0xf]
    %v1139 = vld [vmem:[%s1137 + $0x4] sm:$0xf]
    %v1140 = vld [vmem:[%s1137 + $0x8] sm:$0xf]
    %v1141 = vld [vmem:[%s1137 + $0xc] sm:$0xf]
    %v1142 = vld [vmem:[%s1137 + $0x10] sm:$0xf]
    %v1143 = vld [vmem:[%s1137 + $0x14] sm:$0xf]
    %v1144 = vld [vmem:[%s1137 + $0x18] sm:$0xf]
    %v1145 = vld [vmem:[%s1137 + $0x1c] sm:$0xf]
    %v1146 = vld [vmem:[%s1137 + $0x20] sm:$0xf]
    %v1147 = vld [vmem:[%s1137 + $0x24] sm:$0xf]
    %v1148 = vld [vmem:[%s1137 + $0x28] sm:$0xf]
    %v1149 = vld [vmem:[%s1137 + $0x2c] sm:$0xf]
    %v1150 = vld [vmem:[%s1137 + $0x30] sm:$0xf]
    %v1151 = vld [vmem:[%s1137 + $0x34] sm:$0xf]
    %v1152 = vld [vmem:[%s1137 + $0x38] sm:$0xf]
    %v1153 = vld [vmem:[%s1137 + $0x3c] sm:$0xf]
    %v1154 = vld [vmem:[%s1137 + $0x40] sm:$0xf]
    %v1155 = vld [vmem:[%s1137 + $0x44] sm:$0xf]
    %v1156 = vld [vmem:[%s1137 + $0x48] sm:$0xf]
    %v1157 = vld [vmem:[%s1137 + $0x4c] sm:$0xf]
    %v1158 = vld [vmem:[%s1137 + $0x50] sm:$0xf]
    %v1159 = vld [vmem:[%s1137 + $0x54] sm:$0xf]
    %v1160 = vld [vmem:[%s1137 + $0x58] sm:$0xf]
    %v1161 = vld [vmem:[%s1137 + $0x5c] sm:$0xf]
    %v1162 = vld [vmem:[%s1137 + $0x60] sm:$0xf]
    %v1163 = vld [vmem:[%s1137 + $0x64] sm:$0xf]
    %v1164 = vld [vmem:[%s1137 + $0x68] sm:$0xf]
    %v1165 = vld [vmem:[%s1137 + $0x6c] sm:$0xf]
    %v1166 = vld [vmem:[%s1137 + $0x70] sm:$0xf]
    %v1167 = vld [vmem:[%s1137 + $0x74] sm:$0xf]
    %v1168 = vld [vmem:[%s1137 + $0x78] sm:$0xf]
    %v1169 = vld [vmem:[%s1137 + $0x7c] sm:$0xf]
    %v1170 = vld [vmem:[%s1137 + $0x80] sm:$0xf]
    %v1171 = vld [vmem:[%s1137 + $0x84] sm:$0xf]
    %v1172 = vld [vmem:[%s1137 + $0x88] sm:$0xf]
    %v1173 = vld [vmem:[%s1137 + $0x8c] sm:$0xf]
    %v1174 = vld [vmem:[%s1137 + $0x90] sm:$0xf]
    %v1175 = vld [vmem:[%s1137 + $0x94] sm:$0x3]
    %v1214 = vunpack.c.l.b16 %v1138
    %v1215 = vunpack.c.l.b16 %v1139
    %v1216 = vunpack.c.l.b16 %v1140
    %v1217 = vunpack.c.l.b16 %v1141
    %v1218 = vunpack.c.l.b16 %v1142
    %v1219 = vunpack.c.l.b16 %v1143
    %v1220 = vunpack.c.l.b16 %v1144
    %v1221 = vunpack.c.l.b16 %v1145
    %v1222 = vunpack.c.l.b16 %v1146
    %v1223 = vunpack.c.l.b16 %v1147
    %v1224 = vunpack.c.l.b16 %v1148
    %v1225 = vunpack.c.l.b16 %v1149
    %v1226 = vunpack.c.l.b16 %v1150
    %v1227 = vunpack.c.l.b16 %v1151
    %v1228 = vunpack.c.l.b16 %v1152
    %v1229 = vunpack.c.l.b16 %v1153
    %v1230 = vunpack.c.l.b16 %v1154
    %v1231 = vunpack.c.l.b16 %v1155
    %v1232 = vunpack.c.l.b16 %v1156
    %v1233 = vunpack.c.l.b16 %v1157
    %v1234 = vunpack.c.l.b16 %v1158
    %v1235 = vunpack.c.l.b16 %v1159
    %v1236 = vunpack.c.l.b16 %v1160
    %v1237 = vunpack.c.l.b16 %v1161
    %v1238 = vunpack.c.l.b16 %v1162
    %v1239 = vunpack.c.l.b16 %v1163
    %v1240 = vunpack.c.l.b16 %v1164
    %v1241 = vunpack.c.l.b16 %v1165
    %v1242 = vunpack.c.l.b16 %v1166
    %v1243 = vunpack.c.l.b16 %v1167
    %v1244 = vunpack.c.l.b16 %v1168
    %v1245 = vunpack.c.l.b16 %v1169
    %v1246 = vunpack.c.l.b16 %v1170
    %v1247 = vunpack.c.l.b16 %v1171
    %v1248 = vunpack.c.l.b16 %v1172
    %v1249 = vunpack.c.l.b16 %v1173
    %v1250 = vunpack.c.l.b16 %v1174
    %v1251 = vunpack.c.l.b16 %v1175
    %v1252 = vpack.c.b16 %v1215, %v1214
    %v1253 = vpack.c.b16 %v1217, %v1216
    %v1254 = vpack.c.b16 %v1219, %v1218
    %v1255 = vpack.c.b16 %v1221, %v1220
    %v1256 = vpack.c.b16 %v1223, %v1222
    %v1257 = vpack.c.b16 %v1225, %v1224
    %v1258 = vpack.c.b16 %v1227, %v1226
    %v1259 = vpack.c.b16 %v1229, %v1228
    %v1260 = vpack.c.b16 %v1231, %v1230
    %v1261 = vpack.c.b16 %v1233, %v1232
    %v1262 = vpack.c.b16 %v1235, %v1234
    %v1263 = vpack.c.b16 %v1237, %v1236
    %v1264 = vpack.c.b16 %v1239, %v1238
    %v1265 = vpack.c.b16 %v1241, %v1240
    %v1266 = vpack.c.b16 %v1243, %v1242
    %v1267 = vpack.c.b16 %v1245, %v1244
    %v1268 = vpack.c.b16 %v1247, %v1246
    %v1269 = vpack.c.b16 %v1249, %v1248
    %v1270 = vpack.c.b16 %v1251, %v1250
    %v1290 = vsel %vm409, %v1270, 0
    %1292 = vmatpush.bf16.msra.mxu0 %v1259
    %1293 = vmatpush.bf16.msra.mxu0 %v1258
    %1294 = vmatpush.bf16.msra.mxu0 %v1257
    %1295 = vmatpush.bf16.msra.mxu0 %v1256
    %1296 = vmatpush.bf16.msra.mxu0 %v1255
    %1297 = vmatpush.bf16.msra.mxu0 %v1254
    %1298 = vmatpush.bf16.msra.mxu0 %v1253
    %1299 = vmatpush.bf16.msra.mxu0 %v1252
    %1300 = vmatmul.bf16.gmra.mxu0 %v206
    %v1301 = vpop.f32.mrf.mxu0
    %v1302 = vadd.f32 0.0, %v1301
    %v1303 = vpop.f32.mrf.mxu0
    %v1304 = vadd.f32 0.0, %v1303
    %1305 = vmatmul.bf16.gmra.mxu0 %v209
    %v1306 = vpop.f32.mrf.mxu0
    %v1307 = vadd.f32 0.0, %v1306
    %v1308 = vpop.f32.mrf.mxu0
    %v1309 = vadd.f32 0.0, %v1308
    %1310 = vdwg.mxu0
    %1311 = vmatpush.bf16.msra.mxu0 %v1267
    %1312 = vmatpush.bf16.msra.mxu0 %v1266
    %1313 = vmatpush.bf16.msra.mxu0 %v1265
    %1314 = vmatpush.bf16.msra.mxu0 %v1264
    %1315 = vmatpush.bf16.msra.mxu0 %v1263
    %1316 = vmatpush.bf16.msra.mxu0 %v1262
    %1317 = vmatpush.bf16.msra.mxu0 %v1261
    %1318 = vmatpush.bf16.msra.mxu0 %v1260
    %1319 = vmatmul.bf16.gmra.mxu0 %v207
    %v1320 = vpop.f32.mrf.mxu0
    %v1321 = vadd.f32 %v1302, %v1320
    %v1322 = vpop.f32.mrf.mxu0
    %v1323 = vadd.f32 %v1304, %v1322
    %1324 = vmatmul.bf16.gmra.mxu0 %v210
    %v1325 = vpop.f32.mrf.mxu0
    %v1326 = vadd.f32 %v1307, %v1325
    %v1327 = vpop.f32.mrf.mxu0
    %v1328 = vadd.f32 %v1309, %v1327
    %1329 = vdwg.mxu0
    %1330 = vmatpush.bf16.msra.mxu0 0
    %1331 = vmatpush.bf16.msra.mxu0 0
    %1332 = vmatpush.bf16.msra.mxu0 0
    %1333 = vmatpush.bf16.msra.mxu0 0
    %1334 = vmatpush.bf16.msra.mxu0 0
    %1335 = vmatpush.bf16.msra.mxu0 %v1290
    %1336 = vmatpush.bf16.msra.mxu0 %v1269
    %1337 = vmatpush.bf16.msra.mxu0 %v1268
    %1338 = vmatmul.bf16.gmra.mxu0 %v404
    %v1339 = vpop.f32.mrf.mxu0
    %v1340 = vadd.f32 %v1321, %v1339
    %v1341 = vpop.f32.mrf.mxu0
    %v1342 = vadd.f32 %v1323, %v1341
    %1343 = vmatmul.bf16.gmra.mxu0 %v407
    %v1344 = vpop.f32.mrf.mxu0
    %v1345 = vadd.f32 %v1326, %v1344
    %v1346 = vpop.f32.mrf.mxu0
    %v1347 = vadd.f32 %v1328, %v1346
    %1348 = vdwg.mxu0
    %v1349 = vmul.f32 %v1340, 0.0
    %vm1354 = vcmask 1043456
    %v1355 = vrot.slane %v1340, 4
    %v1356 = vrot.slane %v1342, 4
    %v1357 = vsel %vm1354, %v1355, %v1356
    %v1358 = vrot.slane %v1345, 4
    %v1359 = vsel %vm1354, %v1356, %v1358
    %v1360 = vrot.slane %v1347, 4
    %v1361 = vsel %vm1354, %v1358, %v1360
    %v1367 = vrot.slane %v1349, 4
    %v1369 = vsel %vm1354, %v1360, %v1367
    %v1370 = vadd.f32 %v1133, %v1357
    %v1371 = vadd.f32 %v1134, %v1359
    %v1372 = vadd.f32 %v1135, %v1361
    %v1373 = vadd.f32 %v1136, %v1369
    %v1374 = vld [vmem:[%s3] sm:$0x1]
    %v1376 = vperm.slane %v1374, 0
    %v1378 = vadd.f32 %v1370, %v1376
    %v1379 = vadd.f32 %v1371, %v1376
    %v1380 = vadd.f32 %v1372, %v1376
    %v1381 = vadd.f32 %v1373, %v1376
    %v1382 = vmax.f32 %v1378, 0.0
    %v1383 = vmax.f32 %v1379, 0.0
    %v1384 = vmax.f32 %v1380, 0.0
    %v1385 = vmax.f32 %v1381, 0.0
    %v1386 = vld [vmem:[%s4] sm:$0xff]
    %v1387 = vld [vmem:[%s4 + $0x8] sm:$0xff]
    %v1388 = vld [vmem:[%s4 + $0x10] sm:$0xff]
    %v1389 = vld [vmem:[%s4 + $0x18] sm:$0xff]
    %v1390 = vmul.f32 %v1382, %v1386
    %v1391 = vmul.f32 %v1383, %v1387
    %v1392 = vmul.f32 %v1384, %v1388
    %v1393 = vmul.f32 %v1385, %v1389
    %vm1394 = vcmask 195584
    %v1395 = vsel %vm1394, %v1390, -inf
    %v1396 = vsel %vm1394, %v1391, -inf
    %v1397 = vmax.f32 %v1395, %v1396
    %v1398 = vrot.slane %v1397, 4
    %v1399 = vmax.f32 %v1397, %v1398
    %v1400 = vrot.slane %v1399, 2
    %v1401 = vmax.f32 %v1399, %v1400
    %v1402 = vrot.slane %v1401, 1
    %v1403 = vmax.f32 %v1401, %v1402
    %v1404 = vsel %vm1394, %v1392, -inf
    %v1405 = vsel %vm1394, %v1393, -inf
    %v1406 = vmax.f32 %v1404, %v1405
    %v1407 = vrot.slane %v1406, 4
    %v1408 = vmax.f32 %v1406, %v1407
    %v1409 = vrot.slane %v1408, 2
    %v1410 = vmax.f32 %v1408, %v1409
    %v1411 = vrot.slane %v1410, 1
    %v1412 = vmax.f32 %v1410, %v1411
    %v1413 = vld [vmem:[%s5] sm:$0x1]
    %v1414 = vld [vmem:[#allocation2] sm:$0x1]
    %1416 = vset.pattern.permute.xlu0 0
    %1417 = vperm.xlu0 %1416, %v1414
    %v1418 = vpop.permute.xlu0 %1417
    %v1420 = vperm.slane %v1418, 0
    %vm1423 = vcmask 1041409
    %v1424 = vsel %vm1423, %v1412, %v1403
    %v1426 = vsel %vm1394, %v1413, 0
    %v1428 = vsel %vm1394, %v1424, 0
    %1430 = vmatpush.xpose.msra.mxu0 0.0
    %1431 = vmatpush.xpose.msra.mxu0 0.0
    %1432 = vmatpush.xpose.msra.mxu0 0.0
    %1433 = vmatpush.xpose.msra.mxu0 0.0
    %1434 = vmatpush.xpose.msra.mxu0 0.0
    %1435 = vmatpush.xpose.msra.mxu0 0.0
    %1436 = vmatpush.xpose.msra.mxu0 0.0
    %1437 = vmatpush.xpose.msra.mxu0 0.0
    %1438 = vmatpush.xpose.msra.mxu0 0.0
    %1439 = vmatpush.xpose.msra.mxu0 0.0
    %1440 = vmatpush.xpose.msra.mxu0 0.0
    %1441 = vmatpush.xpose.msra.mxu0 0.0
    %1442 = vmatpush.xpose.msra.mxu0 0.0
    %1443 = vmatpush.xpose.msra.mxu0 0.0
    %1444 = vmatpush.xpose.msra.mxu0 0.0
    %1445 = vmatpush.xpose.msra.mxu0 %v1428
    %1446 = vmatmul.f32.gmra.mxu0 %v1426
    %v1447 = vpop.f32.mrf.mxu0
    %v1448 = vadd.f32 %v1420, %v1447
    %1449 = vdwg.mxu0
    %vm1450 = vcmask 8192
    %1451 = vst.msk [vmem:[#allocation3] sm:$0x1] %vm1450, %v1448
    // Predicated region
    $region30: #{tpu_custom_call.1} parent=1 // pred_check
      _
    $region31: #{tpu_custom_call.1} parent=1 // pred_check_branch
      %1453 = sbr.rel (0) target = $region33
    $region32: #{tpu_custom_call.1} parent=1 // pred_region
      %1455 = vsyncadd [#allocation4], 0
      %s1457 = sshll.u32 [#allocation3], 4
      %s1458 = int_to_ptr.vmem [resolvable:$true] %s1457
      %s1459 = sshll.u32 %s7, 4
      %s1460 = int_to_ptr.hbm [resolvable:$true] %s1459
      %1462 = dma.vmem_to_hbm [thread:$0]  %s1458, 16, %s1460, [#allocation4]
    $region33: #{tpu_custom_call.1} parent=1 // pred_fallthru
      _
    // Predicated region
    $region34: #{tpu_custom_call.1} parent=1 // pred_check
      _
    $region35: #{tpu_custom_call.1} parent=1 // pred_check_branch
      %1464 = sbr.rel (0) target = $region37
    $region36: #{tpu_custom_call.1} parent=1 // pred_region
      %1466 = dma.done [#allocation4], 16
    $region37: #{tpu_custom_call.1} parent=1 // pred_fallthru
      _
    %1467 = vsyncpa [#allocation4], 1

</llo_original>
